<compile_context>
chip_gen: v7x
topology: tpu7x:2x2x1
jax: 0.10.0
libtpu: 0.0.40
codegen_flags: <defaults>
</compile_context>

<pallas_src>
import functools

import numpy as np
import jax
import jax.numpy as jnp
from jax.experimental import pallas as pl
from jax.experimental.pallas import tpu as pltpu

LEAKY_SLOPE = 0.2
BN_EPS = 1e-5


# ------------------------------ small helpers ------------------------------ #

def _ceil_to(x, m):
    return -(-x // m) * m


def tf_same_padding(size, k, s):
    """TF 'SAME' padding exactly as Conv1d_tf / Conv2d_tf compute it."""
    out = -(-size // s)
    total = max(0, (out - 1) * s + k - size)
    return out, total // 2, total - total // 2


def _apply_act(y, act):
    if act == "leaky":
        return jnp.where(y > 0, y, LEAKY_SLOPE * y)
    if act == "relu":
        return jnp.maximum(y, 0.0)
    return y


def fold_affine(p):
    """Fold conv bias + eval-mode BatchNorm into per-channel (scale, shift)."""
    b = p["b"]
    if p["gamma"] is not None:
        sc = p["gamma"] / jnp.sqrt(p["rvar"] + BN_EPS)
        return sc, b * sc + p["beta"] - p["rmean"] * sc
    return None, b


# ----------------------- Pallas kernel 1: fused matmul ---------------------- #

def _matmul_kernel(x_ref, w_ref, sc_ref, sh_ref, o_ref, *, act, apply_scale):
    y = jnp.dot(x_ref[...], w_ref[...], preferred_element_type=jnp.float32)
    if apply_scale:
        y = y * sc_ref[...]
    y = y + sh_ref[...]
    o_ref[...] = _apply_act(y, act).astype(o_ref.dtype)


def fused_matmul(x, w, scale, shift, act, out_dtype=jnp.bfloat16, tm=256):
    """(M, Kin) @ (Kin, Cout) + per-channel affine + activation, tiled over M."""
    M, Kin = x.shape
    Cout = w.shape[1]
    Np = _ceil_to(Cout, 128)                  # lane-dense output stores
    tm = min(tm, _ceil_to(M, 16))
    Mp = _ceil_to(M, tm)
    apply_scale = scale is not None
    if scale is None:
        scale = jnp.ones((Cout,), jnp.float32)
    x_p = jnp.pad(x.astype(jnp.bfloat16), ((0, Mp - M), (0, 0)))
    w_p = jnp.pad(w.astype(jnp.bfloat16), ((0, 0), (0, Np - Cout)))
    sc = jnp.pad(scale.astype(jnp.float32), (0, Np - Cout)).reshape(1, Np)
    sh = jnp.pad(shift.astype(jnp.float32), (0, Np - Cout)).reshape(1, Np)
    out_bytes = np.dtype(out_dtype).itemsize
    y = pl.pallas_call(
        functools.partial(_matmul_kernel, act=act, apply_scale=apply_scale),
        out_shape=jax.ShapeDtypeStruct((Mp, Np), out_dtype),
        grid=(Mp // tm,),
        in_specs=[
            pl.BlockSpec((tm, Kin), lambda i: (i, 0)),
            pl.BlockSpec((Kin, Np), lambda i: (0, 0)),    # weight stays VMEM-resident
            pl.BlockSpec((1, Np), lambda i: (0, 0)),
            pl.BlockSpec((1, Np), lambda i: (0, 0)),
        ],
        out_specs=pl.BlockSpec((tm, Np), lambda i: (i, 0)),
        compiler_params=pltpu.CompilerParams(
            dimension_semantics=("parallel",)),
        cost_estimate=pl.CostEstimate(
            flops=2 * Mp * Kin * Np,
            bytes_accessed=Mp * Kin * 2 + Kin * Np * 2 + Mp * Np * out_bytes,
            transcendentals=0),
    )(x_p, w_p, sc, sh)
    return y[:M, :Cout]


# ----------------- Pallas kernel 2: fused 1D conv (no im2col) ---------------- #

def _conv1d_kernel(*refs, K, stride, act, apply_scale, tt):
    n_x = 2 * stride
    w_ref, sc_ref, sh_ref, o_ref = (refs[n_x], refs[n_x + 1],
                                    refs[n_x + 2], refs[n_x + 3])
    # Per stride-phase, concatenate this tile with its right neighbour (halo) so
    # every K-tap slice is available without an HBM im2col.
    cats = [jnp.concatenate([refs[2 * p][0], refs[2 * p + 1][0]], axis=0)
            for p in range(stride)]
    acc = jnp.zeros((tt, o_ref.shape[-1]), jnp.float32)
    for k in range(K):                                    # K accumulated MXU matmuls
        off = k // stride
        xk = jax.lax.slice_in_dim(cats[k % stride], off, off + tt, axis=0)
        acc = acc + jnp.dot(xk, w_ref[k], preferred_element_type=jnp.float32)
    y = acc
    if apply_scale:
        y = y * sc_ref[...]
    y = y + sh_ref[...]
    o_ref[0] = _apply_act(y, act).astype(o_ref.dtype)


def conv1d_tf_fused(x, w, scale, shift, stride, act,
                    out_dtype=jnp.bfloat16, tt=128):
    """TF-'SAME' Conv1d (+folded BN)(+act).  x: (B, T, Cin) channels-last."""
    B, T, Cin = x.shape
    Cout, _, K = w.shape
    s = stride
    T_out, pad_l, _ = tf_same_padding(T, K, s)
    tt = min(tt, _ceil_to(T_out, 16))
    nT = -(-T_out // tt)
    T_out_pad = nT * tt
    L = (nT + 1) * tt * s                      # padded input length (extra halo block)
    apply_scale = scale is not None
    if scale is None:
        scale = jnp.ones((Cout,), jnp.float32)
    x_pad = jnp.pad(x.astype(jnp.bfloat16),
                    ((0, 0), (pad_l, L - pad_l - T), (0, 0)))
    phases = [x_pad[:, p::s, :] for p in range(s)]        # (B, (nT+1)*tt, Cin) each
    Np = _ceil_to(Cout, 128)
    w_mat = jnp.pad(jnp.transpose(w, (2, 1, 0)).astype(jnp.bfloat16),
                    ((0, 0), (0, 0), (0, Np - Cout)))     # (K, Cin, Np)
    sc = jnp.pad(scale.astype(jnp.float32), (0, Np - Cout)).reshape(1, Np)
    sh = jnp.pad(shift.astype(jnp.float32), (0, Np - Cout)).reshape(1, Np)

    in_specs, args = [], []
    for p in range(s):
        in_specs.append(pl.BlockSpec((1, tt, Cin), lambda b, i: (b, i, 0)))
        in_specs.append(pl.BlockSpec((1, tt, Cin), lambda b, i: (b, i + 1, 0)))
        args += [phases[p], phases[p]]
    in_specs += [
        pl.BlockSpec((K, Cin, Np), lambda b, i: (0, 0, 0)),
        pl.BlockSpec((1, Np), lambda b, i: (0, 0)),
        pl.BlockSpec((1, Np), lambda b, i: (0, 0)),
    ]
    args += [w_mat, sc, sh]

    out_bytes = np.dtype(out_dtype).itemsize
    y = pl.pallas_call(
        functools.partial(_conv1d_kernel, K=K, stride=s, act=act,
                          apply_scale=apply_scale, tt=tt),
        out_shape=jax.ShapeDtypeStruct((B, T_out_pad, Np), out_dtype),
        grid=(B, nT),
        in_specs=in_specs,
        out_specs=pl.BlockSpec((1, tt, Np), lambda b, i: (b, i, 0)),
        compiler_params=pltpu.CompilerParams(
            dimension_semantics=("parallel", "parallel")),
        cost_estimate=pl.CostEstimate(
            flops=2 * B * T_out_pad * K * Cin * Np,
            bytes_accessed=(2 * s * B * (nT + 1) * tt * Cin * 2
                            + K * Cin * Np * 2 + B * T_out_pad * Np * out_bytes),
            transcendentals=0),
    )(*args)
    return y[:, :T_out, :Cout]


# --------------------------- layer wrappers (Pallas) ------------------------- #

def conv1d_layer(x, p, out_dtype=jnp.bfloat16):
    sc, sh = fold_affine(p)
    return conv1d_tf_fused(x, p["w"], sc, sh, p["stride"], p["act"], out_dtype)


def conv2d_layer(x, p, out_dtype=jnp.bfloat16):
    B, H, W, Cin = x.shape
    Cout, _, kh, kw = p["w"].shape
    s = p["stride"]
    if p["padding"] == "SAME":
        H_out, ph_l, ph_r = tf_same_padding(H, kh, s)
        W_out, pw_l, pw_r = tf_same_padding(W, kw, s)
    else:  # VALID
        H_out, W_out = (H - kh) // s + 1, (W - kw) // s + 1
        ph_l = ph_r = pw_l = pw_r = 0
    x_pad = jnp.pad(x, ((0, 0), (ph_l, ph_r), (pw_l, pw_r), (0, 0)))
    cols = [x_pad[:, i:i + s * (H_out - 1) + 1:s, j:j + s * (W_out - 1) + 1:s, :]
            for i in range(kh) for j in range(kw)]
    x_col = jnp.stack(cols, axis=3).reshape(B * H_out * W_out, kh * kw * Cin)
    w_mat = jnp.transpose(p["w"], (2, 3, 1, 0)).reshape(kh * kw * Cin, Cout)
    sc, sh = fold_affine(p)
    y = fused_matmul(x_col, w_mat, sc, sh, p["act"], out_dtype)
    return y.reshape(B, H_out, W_out, Cout)


# ------------------------ layer wrappers (pure-JAX ref) ---------------------- #

def ref_matmul(x, w, scale, shift, act, out_dtype=jnp.bfloat16):
    y = jnp.dot(x.astype(jnp.bfloat16), w.astype(jnp.bfloat16),
                preferred_element_type=jnp.float32)
    if scale is not None:
        y = y * scale[None, :]
    y = y + shift[None, :]
    return _apply_act(y, act).astype(out_dtype)


def ref_conv1d_layer(x, p, out_dtype=jnp.bfloat16):
    _, _, K = p["w"].shape
    s = p["stride"]
    _, pad_l, pad_r = tf_same_padding(x.shape[1], K, s)
    w = jnp.transpose(p["w"], (2, 1, 0)).astype(jnp.bfloat16)
    y = jax.lax.conv_general_dilated(
        x.astype(jnp.bfloat16), w, (s,), [(pad_l, pad_r)],
        dimension_numbers=("NHC", "HIO", "NHC"),
        preferred_element_type=jnp.float32)
    sc, sh = fold_affine(p)
    if sc is not None:
        y = y * sc
    y = y + sh
    return _apply_act(y, p["act"]).astype(out_dtype)


def ref_conv2d_layer(x, p, out_dtype=jnp.bfloat16):
    _, _, kh, kw = p["w"].shape
    s = p["stride"]
    if p["padding"] == "SAME":
        _, ph_l, ph_r = tf_same_padding(x.shape[1], kh, s)
        _, pw_l, pw_r = tf_same_padding(x.shape[2], kw, s)
    else:
        ph_l = ph_r = pw_l = pw_r = 0
    w = jnp.transpose(p["w"], (2, 3, 1, 0)).astype(jnp.bfloat16)
    y = jax.lax.conv_general_dilated(
        x.astype(jnp.bfloat16), w, (s, s), [(ph_l, ph_r), (pw_l, pw_r)],
        dimension_numbers=("NHWC", "HWIO", "NHWC"),
        preferred_element_type=jnp.float32)
    sc, sh = fold_affine(p)
    if sc is not None:
        y = y * sc
    y = y + sh
    return _apply_act(y, p["act"]).astype(out_dtype)


# ------------------------------- shared glue --------------------------------- #

def _linear_resize_axis(x, out_size, axis):
    """1-D linear resize, PyTorch bilinear / align_corners=False convention."""
    in_size = x.shape[axis]
    if in_size == out_size:
        return x
    scale = in_size / out_size
    i = jnp.arange(out_size, dtype=jnp.float32)
    src = jnp.maximum(scale * (i + 0.5) - 0.5, 0.0)
    lo = jnp.floor(src).astype(jnp.int32)
    hi = jnp.minimum(lo + 1, in_size - 1)
    wgt = src - lo.astype(jnp.float32)
    shape = [1] * x.ndim
    shape[axis] = out_size
    wgt = wgt.reshape(shape)
    return jnp.take(x, lo, axis=axis) * (1.0 - wgt) + jnp.take(x, hi, axis=axis) * wgt


def _generator_apply(params, in_spec, pre_poses, time_steps, backend):
    conv1d, conv2d, matmul = backend
    B = in_spec.shape[0]
    T = time_steps

    # ------------------------------ AudioEncoder ------------------------------
    ae = params["audio_encoder"]
    x = in_spec.astype(jnp.bfloat16)[..., None]           # (B, H, W, 1) channels-last
    for p in ae["first_net"]:
        x = conv2d(x, p)
    x = x.astype(jnp.float32)
    x = _linear_resize_axis(x, T, axis=1)                 # F.interpolate(..., (T, 1))
    x = _linear_resize_axis(x, 1, axis=2)
    x = x[:, :, 0, :].astype(jnp.bfloat16)                # squeeze(3) -> (B, T, 256)
    for p in ae["down1"]:
        x = conv1d(x, p)
    skips = [x]
    for p in ae["downs"]:
        x = conv1d(x, p)
        skips.append(x)
    for p, skip in zip(ae["ups"], skips[-2::-1]):         # UnetUp chain
        xr = jnp.repeat(x, 2, axis=1)[:, :skip.shape[1], :]
        x = conv1d(xr + skip, p)
    audio_feat = x                                        # (B, T, 256)

    # --------------------------- pre-pose encoder -----------------------------
    pp = params["pre_pose"]
    pre = pre_poses.reshape(B, -1)
    sc1 = pp["gamma"] / jnp.sqrt(pp["rvar"] + BN_EPS)
    sh1 = pp["b1"] * sc1 + pp["beta"] - pp["rmean"] * sc1
    h = matmul(pre, jnp.transpose(pp["w1"]), sc1, sh1, "relu", jnp.bfloat16)
    pre_feat = matmul(h, jnp.transpose(pp["w2"]), None, pp["b2"], None, jnp.bfloat16)
    pre_feat = jnp.broadcast_to(pre_feat[:, None, :], (B, T, pre_feat.shape[-1]))

    # ----------------------------- decoder + head -----------------------------
    feat = jnp.concatenate([audio_feat, pre_feat], axis=-1)     # (B, T, 272)
    for p in params["decoder"]:
        feat = conv1d(feat, p)
    fo = params["final_out"]                                    # 1x1 conv == matmul
    w = jnp.transpose(fo["w"][:, :, 0])                         # (256, pose_dim)
    y = matmul(feat.reshape(B * T, feat.shape[-1]), w, None, fo["b"],
               None, jnp.float32)
    return y.reshape(B, T, -1)           # == PyTorch out.transpose(1, 2) layout


def generator_forward(params, in_spec, pre_poses, time_steps):
    return _generator_apply(params, in_spec, pre_poses, time_steps,
                            (conv1d_layer, conv2d_layer, fused_matmul))


def generator_reference(params, in_spec, pre_poses, time_steps):
    return _generator_apply(params, in_spec, pre_poses, time_steps,
                            (ref_conv1d_layer, ref_conv2d_layer, ref_matmul))


# ------------------------------- parameters ---------------------------------- #

def make_conv(key, cin, cout, ksize, stride, *, dims, has_bn, act, padding="SAME"):
    kw_, kb_, kg, kbe, km, kv = jax.random.split(key, 6)
    if dims == 1:
        w_shape, fan = (cout, cin, ksize), cin * ksize
    else:
        w_shape, fan = (cout, cin, ksize, ksize), cin * ksize * ksize
    p = dict(
        w=jax.random.normal(kw_, w_shape, jnp.float32) / np.sqrt(fan),
        b=0.05 * jax.random.normal(kb_, (cout,), jnp.float32),
        stride=stride, act=act, padding=padding,
        gamma=None, beta=None, rmean=None, rvar=None)
    if has_bn:
        p["gamma"] = 1.0 + 0.1 * jax.random.normal(kg, (cout,), jnp.float32)
        p["beta"] = 0.1 * jax.random.normal(kbe, (cout,), jnp.float32)
        p["rmean"] = 0.1 * jax.random.normal(km, (cout,), jnp.float32)
        p["rvar"] = 1.0 + jax.random.uniform(kv, (cout,), jnp.float32)
    return p


def init_generator_params(key, pose_dim, n_pre_poses):
    it = iter(jax.random.split(key, 40))
    first_defs = [(1, 64, 3, 1, "SAME"), (64, 64, 4, 2, "SAME"),
                  (64, 128, 3, 1, "SAME"), (128, 128, 4, 2, "SAME"),
                  (128, 256, 3, 1, "SAME"), (256, 256, 4, 2, "SAME"),
                  (256, 256, 3, 1, "SAME"), (256, 256, 3, 1, "VALID")]
    audio = dict(
        first_net=[make_conv(next(it), ci, co, k, s, dims=2, has_bn=True,
                             act="leaky", padding=pad)
                   for (ci, co, k, s, pad) in first_defs],
        down1=[make_conv(next(it), 256, 256, 3, 1, dims=1, has_bn=True, act="leaky")
               for _ in range(2)],
        downs=[make_conv(next(it), 256, 256, 4, 2, dims=1, has_bn=True, act="leaky")
               for _ in range(5)],
        ups=[make_conv(next(it), 256, 256, 3, 1, dims=1, has_bn=True, act="leaky")
             for _ in range(5)],
    )
    d_in = n_pre_poses * pose_dim
    k1, k2, k3, k4, k5, k6, k7, k8 = (next(it) for _ in range(8))
    pre_pose = dict(
        w1=jax.random.normal(k1, (32, d_in), jnp.float32) / np.sqrt(d_in),
        b1=0.05 * jax.random.normal(k2, (32,), jnp.float32),
        gamma=1.0 + 0.1 * jax.random.normal(k3, (32,), jnp.float32),
        beta=0.1 * jax.random.normal(k4, (32,), jnp.float32),
        rmean=0.1 * jax.random.normal(k5, (32,), jnp.float32),
        rvar=1.0 + jax.random.uniform(k6, (32,), jnp.float32),
        w2=jax.random.normal(k7, (16, 32), jnp.float32) / np.sqrt(32),
        b2=0.05 * jax.random.normal(k8, (16,), jnp.float32),
    )
    decoder = [make_conv(next(it), (256 + 16) if i == 0 else 256, 256, 3, 1,
                         dims=1, has_bn=True, act="leaky") for i in range(4)]
    kf1, kf2 = next(it), next(it)
    final_out = dict(
        w=jax.random.normal(kf1, (pose_dim, 256, 1), jnp.float32) / np.sqrt(256),
        b=0.05 * jax.random.normal(kf2, (pose_dim,), jnp.float32),
    )
    return dict(audio_encoder=audio, pre_pose=pre_pose,
                decoder=decoder, final_out=final_out)


# ----------------------------------- main ------------------------------------ #

if __name__ == "__main__":
    B = 2
    N_POSES = 16            # generated time steps
    POSE_DIM = 16
    N_PRE_POSES = 4
    SPEC_H, SPEC_W = 32, 24  # toy spectrogram; reduces to (2, 1) before interpolate

    key = jax.random.PRNGKey(0)
    k_params, k_spec, k_pre = jax.random.split(key, 3)
    params = init_generator_params(k_params, POSE_DIM, N_PRE_POSES)
    in_spec = jax.random.normal(k_spec, (B, SPEC_H, SPEC_W), jnp.float32)
    pre_poses = jax.random.normal(k_pre, (B, N_PRE_POSES, POSE_DIM), jnp.float32)

    out = jax.block_until_ready(
        generator_forward(params, in_spec, pre_poses, N_POSES))
    assert out.shape == (B, N_POSES, POSE_DIM), out.shape

    ref = jax.block_until_ready(
        generator_reference(params, in_spec, pre_poses, N_POSES))
    np.testing.assert_allclose(np.asarray(out), np.asarray(ref),
                               rtol=5e-2, atol=5e-2)

    print("KERNEL_OK")
</pallas_src>

<mosaic_0001>
module attributes {stable_mosaic.version = 11 : i64} {
  func.func @_matmul_kernel(%arg0: i32, %arg1: memref<256x9xbf16, #tpu.memory_space<vmem>>, %arg2: memref<9x128xbf16, #tpu.memory_space<vmem>>, %arg3: memref<1x128xf32, #tpu.memory_space<vmem>>, %arg4: memref<1x128xf32, #tpu.memory_space<vmem>>, %arg5: memref<256x128xbf16, #tpu.memory_space<vmem>>) attributes {dimension_semantics = [#tpu.dimension_semantics<parallel>], iteration_bounds = array<i64: 6>, scalar_prefetch = 0 : i64, scratch_operands = 0 : i64, tpu.core_type = #tpu.core_type<tc>, window_params = [{transform_indices = @transform_0, window_bounds = array<i64: 256, 9>}, {pipeline_mode = #tpu.pipeline_mode<synchronous>, transform_indices = @transform_1, window_bounds = array<i64: 9, 128>}, {pipeline_mode = #tpu.pipeline_mode<synchronous>, transform_indices = @transform_2, window_bounds = array<i64: 1, 128>}, {pipeline_mode = #tpu.pipeline_mode<synchronous>, transform_indices = @transform_3, window_bounds = array<i64: 1, 128>}, {transform_indices = @transform_4, window_bounds = array<i64: 256, 128>}]} {
    %c0 = arith.constant 0 : index
    %c0_0 = arith.constant 0 : index
    %0 = vector.load %arg1[%c0, %c0_0] : memref<256x9xbf16, #tpu.memory_space<vmem>>, vector<256x9xbf16>
    %c0_1 = arith.constant 0 : index
    %c0_2 = arith.constant 0 : index
    %1 = vector.load %arg2[%c0_1, %c0_2] : memref<9x128xbf16, #tpu.memory_space<vmem>>, vector<9x128xbf16>
    %cst = arith.constant dense<0.000000e+00> : vector<256x128xf32>
    %2 = tpu.matmul %0, %1, %cst {dimension_numbers = #tpu.dot_dimension_numbers<[1], [0], [0], [1], [0, 0, 1, 1], [], []>} : vector<256x9xbf16>, vector<9x128xbf16>, vector<256x128xf32> -> vector<256x128xf32>
    %c0_3 = arith.constant 0 : index
    %c0_4 = arith.constant 0 : index
    %3 = vector.load %arg3[%c0_3, %c0_4] : memref<1x128xf32, #tpu.memory_space<vmem>>, vector<1x128xf32>
    %4 = vector.broadcast %3 : vector<1x128xf32> to vector<256x128xf32>
    %5 = arith.mulf %2, %4 : vector<256x128xf32>
    %c0_5 = arith.constant 0 : index
    %c0_6 = arith.constant 0 : index
    %6 = vector.load %arg4[%c0_5, %c0_6] : memref<1x128xf32, #tpu.memory_space<vmem>>, vector<1x128xf32>
    %7 = vector.broadcast %6 : vector<1x128xf32> to vector<256x128xf32>
    %8 = arith.addf %5, %7 : vector<256x128xf32>
    %cst_7 = arith.constant 0.000000e+00 : f32
    %9 = vector.broadcast %cst_7 : f32 to vector<256x128xf32>
    %10 = arith.cmpf ogt, %8, %9 : vector<256x128xf32>
    %cst_8 = arith.constant 2.000000e-01 : f32
    %11 = vector.broadcast %cst_8 : f32 to vector<256x128xf32>
    %12 = arith.mulf %11, %8 : vector<256x128xf32>
    %13 = arith.select %10, %8, %12 : vector<256x128xi1>, vector<256x128xf32>
    %14 = arith.truncf %13 : vector<256x128xf32> to vector<256x128xbf16>
    %c0_9 = arith.constant 0 : index
    %c0_10 = arith.constant 0 : index
    %15 = vector.load %arg5[%c0_9, %c0_10] : memref<256x128xbf16, #tpu.memory_space<vmem>>, vector<256x128xbf16>
    tpu.vector_store %arg5[%c0_9, %c0_10], %14 {strides = array<i32>} : memref<256x128xbf16, #tpu.memory_space<vmem>>, vector<256x128xbf16>,
    return
  }
  func.func @transform_0(%arg0: i32) -> (i32, i32) {
    %c0_i32 = arith.constant 0 : i32
    %c0_i32_0 = arith.constant 0 : i32
    return %arg0, %c0_i32 : i32, i32
  }
  func.func @transform_1(%arg0: i32) -> (i32, i32) {
    %c0_i32 = arith.constant 0 : i32
    %c0_i32_0 = arith.constant 0 : i32
    %c0_i32_1 = arith.constant 0 : i32
    return %c0_i32, %c0_i32_0 : i32, i32
  }
  func.func @transform_2(%arg0: i32) -> (i32, i32) {
    %c0_i32 = arith.constant 0 : i32
    %c0_i32_0 = arith.constant 0 : i32
    %c0_i32_1 = arith.constant 0 : i32
    return %c0_i32, %c0_i32_0 : i32, i32
  }
  func.func @transform_3(%arg0: i32) -> (i32, i32) {
    %c0_i32 = arith.constant 0 : i32
    %c0_i32_0 = arith.constant 0 : i32
    %c0_i32_1 = arith.constant 0 : i32
    return %c0_i32, %c0_i32_0 : i32, i32
  }
  func.func @transform_4(%arg0: i32) -> (i32, i32) {
    %c0_i32 = arith.constant 0 : i32
    %c0_i32_0 = arith.constant 0 : i32
    return %arg0, %c0_i32 : i32, i32
  }
}

</mosaic_0001>

<llo_original>
// kernel: tpu_custom_call.1
$region0: #{tpu_custom_call.1}
  #allocation0 [shape = 'u32[]', space=smem, size = 0x4, offset = 0x4, fixed_abs, tag = 'smem constant byte address 0x4 - core index']
  #allocation1 [shape = 'u32[144,128]{1,0:T(1,128)}', space=vmem, size = 0x12000, scoped, tag = 'internal scratch']
  %s0 = inlined_call_operand.vmem [shape: bf16[1536,9], index: 0, kind: input, shape index: {}]
  %s1 = inlined_call_operand.vmem [shape: bf16[9,128], index: 1, kind: input, shape index: {}]
  %s2 = inlined_call_operand.vmem [shape: f32[1,128], index: 2, kind: input, shape index: {}]
  %s3 = inlined_call_operand.vmem [shape: f32[1,128], index: 3, kind: input, shape index: {}]
  %s4 = inlined_call_operand.hbm [shape: bf16[1536,128], index: 4, kind: output, shape index: {}]
  %s5 = sld [smem:[#allocation0]]
  $region49: #{tpu_custom_call.1} parent=0
    _
  %s7 = ssub.s32 1, %s5
  %s8 = scalar_select 0, %s7, %s5
  $region1: #{tpu_custom_call.1} parent=0
    #allocation2 [shape = 'u8[131072]{0}', space=vmem, size = 0x20000, scoped, tag = 'output window, operand 0']
    #allocation3 [shape = 's32[2]{0}', space=sflag, size = 0x8, scoped, tag = 'scoped memory for tpu_custom_call.1']
    %9 = vsyncpa [#allocation3], 0
    %s10 = scalar_lea.sflag [#allocation3], 1
    %11 = vsyncpa %s10, 0
    loop: start=0, step=1, limit=8
    $region2: #{tpu_custom_call.1} parent=1 // loop_pre_header
      _
    $region3: #{tpu_custom_call.1} parent=1 // loop_header
      %s13 = sphi 0, %s17
      %p14 = scmp.ge.s32.totalorder %s13, 8
      %s23 = sphi 0, %s25
      %s26 = sphi 0, %s23
      %s27 = sphi 0, %s26
      %s43 = sphi 0, %s27
      %s47 = sphi 0, %s47
      %s49 = sphi 0, %s47
      %s50 = sphi 0, %s49
      %s64 = sphi 0, %s50
      %s68 = sphi 0, %s68
      %s70 = sphi 0, %s68
      %s71 = sphi 0, %s70
      %s85 = sphi 0, %s71
      %s89 = sphi 0, %s89
      %s91 = sphi 0, %s89
      %s92 = sphi 0, %s91
      %s106 = sphi 0, %s92
      %s112 = sphi 0, %s114
      %s115 = sphi 0, %s112
      %s116 = sphi 0, %s115
      %s132 = sphi 0, %s116
    $region4: #{tpu_custom_call.1} parent=1 // loop_header_branch
      %16 = sbr.rel (%p14) target = $region8
    $region5: #{tpu_custom_call.1} parent=1 // loop_body
      %s18 = ssub.s32 %s13, 1
      %s19 = ssub.s32 %s13, 2
      %s20 = sadd.s32 %s13, 1
      %s21 = ssub.s32 %s13, %s20
      %p22 = scmp.eq.s32.totalorder %s21, 0
      %s24 = sadd.s32 %s23, 1
      %s25 = scalar_select %p22, %s23, %s24
      %p28 = pneg %p22
      %p29 = scmp.eq.s32.totalorder %s13, 5
      %p30 = por %p28, %p29
      %p31 = scmp.ne.s32.totalorder %s23, %s26
      %p32 = scmp.eq.s32.totalorder %s13, 0
      %p33 = por %p31, %p32
      %p34 = scmp.ne.s32.totalorder %s23, %s26
      %p35 = scmp.eq.s32.totalorder %s18, 5
      %p36 = por %p34, %p35
      %p37 = scmp.ne.s32.totalorder %s26, %s27
      %p38 = scmp.eq.s32.totalorder %s18, 0
      %p39 = por %p37, %p38
      %p40 = scmp.ne.s32.totalorder %s26, %s27
      %p41 = scmp.eq.s32.totalorder %s19, 5
      %p42 = por %p40, %p41
      %p44 = scmp.ne.s32.totalorder %s27, %s43
      %p45 = scmp.eq.s32.totalorder %s19, 0
      %p46 = por %p44, %p45
      %s48 = sadd.s32 %s47, 1
      %p51 = scmp.eq.s32.totalorder %s13, 5
      %p52 = scmp.ne.s32.totalorder %s47, %s49
      %p53 = scmp.eq.s32.totalorder %s13, 0
      %p54 = por %p52, %p53
      %p55 = scmp.ne.s32.totalorder %s47, %s49
      %p56 = scmp.eq.s32.totalorder %s18, 5
      %p57 = por %p55, %p56
      %p58 = scmp.ne.s32.totalorder %s49, %s50
      %p59 = scmp.eq.s32.totalorder %s18, 0
      %p60 = por %p58, %p59
      %p61 = scmp.ne.s32.totalorder %s49, %s50
      %p62 = scmp.eq.s32.totalorder %s19, 5
      %p63 = por %p61, %p62
      %p65 = scmp.ne.s32.totalorder %s50, %s64
      %p66 = scmp.eq.s32.totalorder %s19, 0
      %p67 = por %p65, %p66
      %s69 = sadd.s32 %s68, 1
      %p72 = scmp.eq.s32.totalorder %s13, 5
      %p73 = scmp.ne.s32.totalorder %s68, %s70
      %p74 = scmp.eq.s32.totalorder %s13, 0
      %p75 = por %p73, %p74
      %p76 = scmp.ne.s32.totalorder %s68, %s70
      %p77 = scmp.eq.s32.totalorder %s18, 5
      %p78 = por %p76, %p77
      %p79 = scmp.ne.s32.totalorder %s70, %s71
      %p80 = scmp.eq.s32.totalorder %s18, 0
      %p81 = por %p79, %p80
      %p82 = scmp.ne.s32.totalorder %s70, %s71
      %p83 = scmp.eq.s32.totalorder %s19, 5
      %p84 = por %p82, %p83
      %p86 = scmp.ne.s32.totalorder %s71, %s85
      %p87 = scmp.eq.s32.totalorder %s19, 0
      %p88 = por %p86, %p87
      %s90 = sadd.s32 %s89, 1
      %p93 = scmp.eq.s32.totalorder %s13, 5
      %p94 = scmp.ne.s32.totalorder %s89, %s91
      %p95 = scmp.eq.s32.totalorder %s13, 0
      %p96 = por %p94, %p95
      %p97 = scmp.ne.s32.totalorder %s89, %s91
      %p98 = scmp.eq.s32.totalorder %s18, 5
      %p99 = por %p97, %p98
      %p100 = scmp.ne.s32.totalorder %s91, %s92
      %p101 = scmp.eq.s32.totalorder %s18, 0
      %p102 = por %p100, %p101
      %p103 = scmp.ne.s32.totalorder %s91, %s92
      %p104 = scmp.eq.s32.totalorder %s19, 5
      %p105 = por %p103, %p104
      %p107 = scmp.ne.s32.totalorder %s92, %s106
      %p108 = scmp.eq.s32.totalorder %s19, 0
      %p109 = por %p107, %p108
      %s110 = ssub.s32 %s13, %s20
      %p111 = scmp.eq.s32.totalorder %s110, 0
      %s113 = sadd.s32 %s112, 1
      %s114 = scalar_select %p111, %s112, %s113
      %p117 = pneg %p111
      %p118 = scmp.eq.s32.totalorder %s13, 5
      %p119 = por %p117, %p118
      %p120 = scmp.ne.s32.totalorder %s112, %s115
      %p121 = scmp.eq.s32.totalorder %s13, 0
      %p122 = por %p120, %p121
      %p123 = scmp.ne.s32.totalorder %s112, %s115
      %p124 = scmp.eq.s32.totalorder %s18, 5
      %p125 = por %p123, %p124
      %p126 = scmp.ne.s32.totalorder %s115, %s116
      %p127 = scmp.eq.s32.totalorder %s18, 0
      %p128 = por %p126, %p127
      %p129 = scmp.ne.s32.totalorder %s115, %s116
      %p130 = scmp.eq.s32.totalorder %s19, 5
      %p131 = por %p129, %p130
      %p133 = scmp.ne.s32.totalorder %s116, %s132
      %p134 = scmp.eq.s32.totalorder %s19, 0
      %p135 = por %p133, %p134
      %p136 = scmp.le.s32.totalorder 1, %s13
      %p137 = scmp.lt.s32.totalorder %s13, 7
      %p138 = pnand %p136, %p137
      %p139 = pneg %p138
      // Predicated region
      $region9: #{tpu_custom_call.1} parent=5 // pred_check
        _
      $region10: #{tpu_custom_call.1} parent=5 // pred_check_branch
        %141 = sbr.rel (%p138) target = $region12
      $region11: #{tpu_custom_call.1} parent=5 // pred_region
        %s142 = ssub.s32 %s13, 1
        // Predicated region
        $region13: #{tpu_custom_call.1} parent=11 // pred_check
          %p143 = pneg %p60
        $region14: #{tpu_custom_call.1} parent=11 // pred_check_branch
          %145 = sbr.rel (%p143) target = $region16
        $region15: #{tpu_custom_call.1} parent=11 // pred_region
          _
        $region16: #{tpu_custom_call.1} parent=11 // pred_fallthru
          _
        // Predicated region
        $region17: #{tpu_custom_call.1} parent=11 // pred_check
          %p146 = pneg %p81
        $region18: #{tpu_custom_call.1} parent=11 // pred_check_branch
          %148 = sbr.rel (%p146) target = $region20
        $region19: #{tpu_custom_call.1} parent=11 // pred_region
          _
        $region20: #{tpu_custom_call.1} parent=11 // pred_fallthru
          _
        // Predicated region
        $region21: #{tpu_custom_call.1} parent=11 // pred_check
          %p149 = pneg %p102
        $region22: #{tpu_custom_call.1} parent=11 // pred_check_branch
          %151 = sbr.rel (%p149) target = $region24
        $region23: #{tpu_custom_call.1} parent=11 // pred_region
          _
        $region24: #{tpu_custom_call.1} parent=11 // pred_fallthru
          _
      $region12: #{tpu_custom_call.1} parent=5 // pred_fallthru
        _
      %p152 = scmp.lt.s32.totalorder %s13, 6
      // Predicated region
      $region25: #{tpu_custom_call.1} parent=5 // pred_check
        %p153 = pneg %p152
      $region26: #{tpu_custom_call.1} parent=5 // pred_check_branch
        %155 = sbr.rel (%p153) target = $region28
      $region27: #{tpu_custom_call.1} parent=5 // pred_region
        // Predicated region
        $region29: #{tpu_custom_call.1} parent=27 // pred_check
          %p156 = pneg %p33
        $region30: #{tpu_custom_call.1} parent=27 // pred_check_branch
          %158 = sbr.rel (%p156) target = $region32
        $region31: #{tpu_custom_call.1} parent=27 // pred_region
          %s159 = smul.u32 32, %s13
          %p160 = scmp.lt.s32.totalorder %s159, 191
          %s161 = scalar_select %p160, %s159, 191
          %s162 = smul.addr %s161, 4
          %s163 = scalar_lea.vmem %s0, %s162
          %s164 = smul.u32 32, %s13
        $region32: #{tpu_custom_call.1} parent=27 // pred_fallthru
          _
      $region28: #{tpu_custom_call.1} parent=5 // pred_fallthru
        _
      %p165 = scmp.le.s32.totalorder 1, %s13
      %p166 = scmp.lt.s32.totalorder %s13, 7
      %p167 = pnand %p165, %p166
      %p168 = pneg %p167
      // Predicated region
      $region33: #{tpu_custom_call.1} parent=5 // pred_check
        _
      $region34: #{tpu_custom_call.1} parent=5 // pred_check_branch
        %170 = sbr.rel (%p167) target = $region36
      $region35: #{tpu_custom_call.1} parent=5 // pred_region
        %s171 = ssub.s32 %s13, 1
        %s172 = smul.u32 32, %s18
        %p173 = scmp.lt.s32.totalorder %s172, 191
        %s174 = scalar_select %p173, %s172, 191
        %s175 = smul.addr %s174, 4
        %s176 = scalar_lea.vmem %s0, %s175
        %p177 = pneg %p39
        %p178 = pneg %p36
        %p179 = pneg %p60
        %p180 = pneg %p57
        %p181 = pneg %p81
        %p182 = pneg %p78
        %p183 = pneg %p102
        %p184 = pneg %p99
        %p185 = pneg %p128
        %p186 = pneg %p125
        %s187 = sand.u32 %s115, 1
        %s188 = scalar_lea.sflag [#allocation3], %s187
        %s189 = sand.u32 %s115, 1
        %s190 = smul.addr %s189, 128
        %s191 = scalar_lea.vmem [#allocation2], %s190
        %s192 = smul.u32 32, %s18
        %p193 = scmp.lt.s32.totalorder %s192, 191
        %s194 = scalar_select %p193, %s192, 191
        %s195 = smul.addr %s194, 4
        %s196 = scalar_lea.vmem %s0, %s195
        %s197 = smul.u32 32, %s18
        %s198 = smul.u32 32, %s18
        %v200 = vld [vmem:[%s196] sm:$0xf]
        %v201 = vld [vmem:[%s196 + $0x4] sm:$0xf]
        %v202 = vld [vmem:[%s196 + $0x8] sm:$0xf]
        %v203 = vld [vmem:[%s196 + $0xc] sm:$0xf]
        %v204 = vld [vmem:[%s196 + $0x10] sm:$0xf]
        %v205 = vld [vmem:[%s196 + $0x14] sm:$0xf]
        %v206 = vld [vmem:[%s196 + $0x18] sm:$0xf]
        %v207 = vld [vmem:[%s196 + $0x1c] sm:$0xf]
        %v208 = vld [vmem:[%s196 + $0x20] sm:$0xf]
        %v209 = vld [vmem:[%s196 + $0x24] sm:$0xf]
        %v210 = vld [vmem:[%s196 + $0x28] sm:$0xf]
        %v211 = vld [vmem:[%s196 + $0x2c] sm:$0xf]
        %v212 = vld [vmem:[%s196 + $0x30] sm:$0xf]
        %v213 = vld [vmem:[%s196 + $0x34] sm:$0xf]
        %v214 = vld [vmem:[%s196 + $0x38] sm:$0xf]
        %v215 = vld [vmem:[%s196 + $0x3c] sm:$0xf]
        %v216 = vld [vmem:[%s196 + $0x40] sm:$0xf]
        %v217 = vld [vmem:[%s196 + $0x44] sm:$0xf]
        %v218 = vld [vmem:[%s196 + $0x48] sm:$0xf]
        %v219 = vld [vmem:[%s196 + $0x4c] sm:$0xf]
        %v220 = vld [vmem:[%s196 + $0x50] sm:$0xf]
        %v221 = vld [vmem:[%s196 + $0x54] sm:$0xf]
        %v222 = vld [vmem:[%s196 + $0x58] sm:$0xf]
        %v223 = vld [vmem:[%s196 + $0x5c] sm:$0xf]
        %v224 = vld [vmem:[%s196 + $0x60] sm:$0xf]
        %v225 = vld [vmem:[%s196 + $0x64] sm:$0xf]
        %v226 = vld [vmem:[%s196 + $0x68] sm:$0xf]
        %v227 = vld [vmem:[%s196 + $0x6c] sm:$0xf]
        %v228 = vld [vmem:[%s196 + $0x70] sm:$0xf]
        %v229 = vld [vmem:[%s196 + $0x74] sm:$0xf]
        %v230 = vld [vmem:[%s196 + $0x78] sm:$0xf]
        %v231 = vld [vmem:[%s196 + $0x7c] sm:$0xf]
        %v232 = vld [vmem:[%s1] sm:$0xf]
        %v233 = vld [vmem:[%s1 + $0x4] sm:$0x1]
        %v266 = vunpack.c.l.b16 %v200
        %v267 = vunpack.c.l.b16 %v201
        %v268 = vunpack.c.l.b16 %v202
        %v269 = vunpack.c.l.b16 %v203
        %v270 = vunpack.c.l.b16 %v204
        %v271 = vunpack.c.l.b16 %v205
        %v272 = vunpack.c.l.b16 %v206
        %v273 = vunpack.c.l.b16 %v207
        %v274 = vunpack.c.l.b16 %v208
        %v275 = vunpack.c.l.b16 %v209
        %v276 = vunpack.c.l.b16 %v210
        %v277 = vunpack.c.l.b16 %v211
        %v278 = vunpack.c.l.b16 %v212
        %v279 = vunpack.c.l.b16 %v213
        %v280 = vunpack.c.l.b16 %v214
        %v281 = vunpack.c.l.b16 %v215
        %v282 = vunpack.c.l.b16 %v216
        %v283 = vunpack.c.l.b16 %v217
        %v284 = vunpack.c.l.b16 %v218
        %v285 = vunpack.c.l.b16 %v219
        %v286 = vunpack.c.l.b16 %v220
        %v287 = vunpack.c.l.b16 %v221
        %v288 = vunpack.c.l.b16 %v222
        %v289 = vunpack.c.l.b16 %v223
        %v290 = vunpack.c.l.b16 %v224
        %v291 = vunpack.c.l.b16 %v225
        %v292 = vunpack.c.l.b16 %v226
        %v293 = vunpack.c.l.b16 %v227
        %v294 = vunpack.c.l.b16 %v228
        %v295 = vunpack.c.l.b16 %v229
        %v296 = vunpack.c.l.b16 %v230
        %v297 = vunpack.c.l.b16 %v231
        %v298 = vpack.c.b16 %v267, %v266
        %v299 = vpack.c.b16 %v269, %v268
        %v300 = vpack.c.b16 %v271, %v270
        %v301 = vpack.c.b16 %v273, %v272
        %v302 = vpack.c.b16 %v275, %v274
        %v303 = vpack.c.b16 %v277, %v276
        %v304 = vpack.c.b16 %v279, %v278
        %v305 = vpack.c.b16 %v281, %v280
        %v306 = vpack.c.b16 %v283, %v282
        %v307 = vpack.c.b16 %v285, %v284
        %v308 = vpack.c.b16 %v287, %v286
        %v309 = vpack.c.b16 %v289, %v288
        %v310 = vpack.c.b16 %v291, %v290
        %v311 = vpack.c.b16 %v293, %v292
        %v312 = vpack.c.b16 %v295, %v294
        %v313 = vpack.c.b16 %v297, %v296
        %v316 = vunpack.c.l.b16 %v232
        %v317 = vunpack.c.l.b16 %v233
        %v318 = vpack.c.b16 %v317, %v316
        %vm319 = vcmask 72704
        %v321 = vsel %vm319, %v298, 0
        %v324 = vsel %vm319, %v299, 0
        %v327 = vsel %vm319, %v300, 0
        %v330 = vsel %vm319, %v301, 0
        %v333 = vsel %vm319, %v302, 0
        %v336 = vsel %vm319, %v303, 0
        %v339 = vsel %vm319, %v304, 0
        %v342 = vsel %vm319, %v305, 0
        %v345 = vsel %vm319, %v306, 0
        %v348 = vsel %vm319, %v307, 0
        %v351 = vsel %vm319, %v308, 0
        %v354 = vsel %vm319, %v309, 0
        %v357 = vsel %vm319, %v310, 0
        %v360 = vsel %vm319, %v311, 0
        %v363 = vsel %vm319, %v312, 0
        %v366 = vsel %vm319, %v313, 0
        %vm368 = vcmask 1043456
        %vm369 = vcmask 1044480
        %v370 = vsel %vm368, 4294967295, 65535
        %v371 = vsel %vm369, %v370, 0
        %v373 = vand.u32 %v318, %v371
        %375 = vmatprep.subr.bf16.mxu0 0
        %376 = vmatpush1.bf16.msra.mxu0 %v373
        %377 = vmatprep.subr.bf16.mxu0 0
        %378 = vmatpush1.bf16.msra.mxu0 0
        %379 = vmatprep.subr.bf16.mxu0 0
        %380 = vmatpush1.bf16.msra.mxu0 0
        %381 = vmatprep.subr.bf16.mxu0 0
        %382 = vmatpush1.bf16.msra.mxu0 0
        %383 = vmatprep.subr.bf16.mxu0 0
        %384 = vmatpush1.bf16.msra.mxu0 0
        %385 = vmatprep.subr.bf16.mxu0 0
        %386 = vmatpush1.bf16.msra.mxu0 0
        %387 = vmatprep.subr.bf16.mxu0 0
        %388 = vmatpush1.bf16.msra.mxu0 0
        %389 = vmatprep.subr.bf16.mxu0 0
        %390 = vmatpush1.bf16.msra.mxu0 0
        %391 = vmatprep.subr.bf16.mxu0 0
        %392 = vmatpush1.bf16.msra.mxu0 0
        %393 = vmatprep.subr.bf16.mxu0 0
        %394 = vmatpush1.bf16.msra.mxu0 0
        %395 = vmatprep.subr.bf16.mxu0 0
        %396 = vmatpush1.bf16.msra.mxu0 0
        %397 = vmatprep.subr.bf16.mxu0 0
        %398 = vmatpush1.bf16.msra.mxu0 0
        %399 = vmatprep.subr.bf16.mxu0 0
        %400 = vmatpush1.bf16.msra.mxu0 0
        %401 = vmatprep.subr.bf16.mxu0 0
        %402 = vmatpush1.bf16.msra.mxu0 0
        %403 = vmatprep.subr.bf16.mxu0 0
        %404 = vmatpush1.bf16.msra.mxu0 0
        %405 = vmatprep.subr.bf16.mxu0 0
        %406 = vmatpush1.bf16.msra.mxu0 0
        %407 = vmatprep.mubr.bf16.mxu0 0
        %408 = vmatmul.mubr.bf16.gmra.mrb[0].mxu0 %v321
        %v409 = vpop.f32.mrb[0].mxu0
        %v410 = vadd.f32 0.0, %v409
        %v411 = vpop.f32.mrb[0].mxu0
        %v412 = vpop.f32.mrb[0].mxu0
        %v413 = vadd.f32 0.0, %v412
        %v414 = vpop.f32.mrb[0].mxu0
        %415 = vmatprep.mubr.bf16.mxu0 0
        %416 = vmatmul.mubr.bf16.gmra.mrb[0].mxu0 %v324
        %v417 = vpop.f32.mrb[0].mxu0
        %v418 = vadd.f32 0.0, %v417
        %v419 = vpop.f32.mrb[0].mxu0
        %v420 = vpop.f32.mrb[0].mxu0
        %v421 = vadd.f32 0.0, %v420
        %v422 = vpop.f32.mrb[0].mxu0
        %423 = vmatprep.mubr.bf16.mxu0 0
        %424 = vmatmul.mubr.bf16.gmra.mrb[0].mxu0 %v327
        %v425 = vpop.f32.mrb[0].mxu0
        %v426 = vadd.f32 0.0, %v425
        %v427 = vpop.f32.mrb[0].mxu0
        %v428 = vpop.f32.mrb[0].mxu0
        %v429 = vadd.f32 0.0, %v428
        %v430 = vpop.f32.mrb[0].mxu0
        %431 = vmatprep.mubr.bf16.mxu0 0
        %432 = vmatmul.mubr.bf16.gmra.mrb[0].mxu0 %v330
        %v433 = vpop.f32.mrb[0].mxu0
        %v434 = vadd.f32 0.0, %v433
        %v435 = vpop.f32.mrb[0].mxu0
        %v436 = vpop.f32.mrb[0].mxu0
        %v437 = vadd.f32 0.0, %v436
        %v438 = vpop.f32.mrb[0].mxu0
        %439 = vmatprep.mubr.bf16.mxu0 0
        %440 = vmatmul.mubr.bf16.gmra.mrb[0].mxu0 %v333
        %v441 = vpop.f32.mrb[0].mxu0
        %v442 = vadd.f32 0.0, %v441
        %v443 = vpop.f32.mrb[0].mxu0
        %v444 = vpop.f32.mrb[0].mxu0
        %v445 = vadd.f32 0.0, %v444
        %v446 = vpop.f32.mrb[0].mxu0
        %447 = vmatprep.mubr.bf16.mxu0 0
        %448 = vmatmul.mubr.bf16.gmra.mrb[0].mxu0 %v336
        %v449 = vpop.f32.mrb[0].mxu0
        %v450 = vadd.f32 0.0, %v449
        %v451 = vpop.f32.mrb[0].mxu0
        %v452 = vpop.f32.mrb[0].mxu0
        %v453 = vadd.f32 0.0, %v452
        %v454 = vpop.f32.mrb[0].mxu0
        %455 = vmatprep.mubr.bf16.mxu0 0
        %456 = vmatmul.mubr.bf16.gmra.mrb[0].mxu0 %v339
        %v457 = vpop.f32.mrb[0].mxu0
        %v458 = vadd.f32 0.0, %v457
        %v459 = vpop.f32.mrb[0].mxu0
        %v460 = vpop.f32.mrb[0].mxu0
        %v461 = vadd.f32 0.0, %v460
        %v462 = vpop.f32.mrb[0].mxu0
        %463 = vmatprep.mubr.bf16.mxu0 0
        %464 = vmatmul.mubr.bf16.gmra.mrb[0].mxu0 %v342
        %v465 = vpop.f32.mrb[0].mxu0
        %v466 = vadd.f32 0.0, %v465
        %v467 = vpop.f32.mrb[0].mxu0
        %v468 = vpop.f32.mrb[0].mxu0
        %v469 = vadd.f32 0.0, %v468
        %v470 = vpop.f32.mrb[0].mxu0
        %471 = vmatprep.mubr.bf16.mxu0 0
        %472 = vmatmul.mubr.bf16.gmra.mrb[0].mxu0 %v345
        %v473 = vpop.f32.mrb[0].mxu0
        %v474 = vadd.f32 0.0, %v473
        %v475 = vpop.f32.mrb[0].mxu0
        %v476 = vpop.f32.mrb[0].mxu0
        %v477 = vadd.f32 0.0, %v476
        %v478 = vpop.f32.mrb[0].mxu0
        %479 = vmatprep.mubr.bf16.mxu0 0
        %480 = vmatmul.mubr.bf16.gmra.mrb[0].mxu0 %v348
        %v481 = vpop.f32.mrb[0].mxu0
        %v482 = vadd.f32 0.0, %v481
        %v483 = vpop.f32.mrb[0].mxu0
        %v484 = vpop.f32.mrb[0].mxu0
        %v485 = vadd.f32 0.0, %v484
        %v486 = vpop.f32.mrb[0].mxu0
        %487 = vmatprep.mubr.bf16.mxu0 0
        %488 = vmatmul.mubr.bf16.gmra.mrb[0].mxu0 %v351
        %v489 = vpop.f32.mrb[0].mxu0
        %v490 = vadd.f32 0.0, %v489
        %v491 = vpop.f32.mrb[0].mxu0
        %v492 = vpop.f32.mrb[0].mxu0
        %v493 = vadd.f32 0.0, %v492
        %v494 = vpop.f32.mrb[0].mxu0
        %495 = vmatprep.mubr.bf16.mxu0 0
        %496 = vmatmul.mubr.bf16.gmra.mrb[0].mxu0 %v354
        %v497 = vpop.f32.mrb[0].mxu0
        %v498 = vadd.f32 0.0, %v497
        %v499 = vpop.f32.mrb[0].mxu0
        %v500 = vpop.f32.mrb[0].mxu0
        %v501 = vadd.f32 0.0, %v500
        %v502 = vpop.f32.mrb[0].mxu0
        %503 = vmatprep.mubr.bf16.mxu0 0
        %504 = vmatmul.mubr.bf16.gmra.mrb[0].mxu0 %v357
        %v505 = vpop.f32.mrb[0].mxu0
        %v506 = vadd.f32 0.0, %v505
        %v507 = vpop.f32.mrb[0].mxu0
        %v508 = vpop.f32.mrb[0].mxu0
        %v509 = vadd.f32 0.0, %v508
        %v510 = vpop.f32.mrb[0].mxu0
        %511 = vmatprep.mubr.bf16.mxu0 0
        %512 = vmatmul.mubr.bf16.gmra.mrb[0].mxu0 %v360
        %v513 = vpop.f32.mrb[0].mxu0
        %v514 = vadd.f32 0.0, %v513
        %v515 = vpop.f32.mrb[0].mxu0
        %v516 = vpop.f32.mrb[0].mxu0
        %v517 = vadd.f32 0.0, %v516
        %v518 = vpop.f32.mrb[0].mxu0
        %519 = vmatprep.mubr.bf16.mxu0 0
        %520 = vmatmul.mubr.bf16.gmra.mrb[0].mxu0 %v363
        %v521 = vpop.f32.mrb[0].mxu0
        %v522 = vadd.f32 0.0, %v521
        %v523 = vpop.f32.mrb[0].mxu0
        %v524 = vpop.f32.mrb[0].mxu0
        %v525 = vadd.f32 0.0, %v524
        %v526 = vpop.f32.mrb[0].mxu0
        %527 = vmatprep.mubr.bf16.mxu0 0
        %528 = vmatmul.mubr.bf16.gmra.mrb[0].mxu0 %v366
        %v529 = vpop.f32.mrb[0].mxu0
        %v530 = vadd.f32 0.0, %v529
        %v531 = vpop.f32.mrb[0].mxu0
        %v532 = vpop.f32.mrb[0].mxu0
        %v533 = vadd.f32 0.0, %v532
        %v534 = vpop.f32.mrb[0].mxu0
        %535 = vdwg.mxu0
        %v536 = vld [vmem:[%s2] sm:$0x1]
        %v538 = vlaneseq
        %v539 = vshrl.u32 %v538, 7
        %v540 = vsub.s32 0, %v539
        %v541 = vrot.slane %v536, %v540
        %v543 = vmul.f32 %v410, %v541
        %v544 = vmul.f32 %v413, %v541
        %v545 = vmul.f32 %v418, %v541
        %v546 = vmul.f32 %v421, %v541
        %v547 = vmul.f32 %v426, %v541
        %v548 = vmul.f32 %v429, %v541
        %v549 = vmul.f32 %v434, %v541
        %v550 = vmul.f32 %v437, %v541
        %v551 = vmul.f32 %v442, %v541
        %v552 = vmul.f32 %v445, %v541
        %v553 = vmul.f32 %v450, %v541
        %v554 = vmul.f32 %v453, %v541
        %v555 = vmul.f32 %v458, %v541
        %v556 = vmul.f32 %v461, %v541
        %v557 = vmul.f32 %v466, %v541
        %v558 = vmul.f32 %v469, %v541
        %v559 = vmul.f32 %v474, %v541
        %v560 = vmul.f32 %v477, %v541
        %v561 = vmul.f32 %v482, %v541
        %v562 = vmul.f32 %v485, %v541
        %v563 = vmul.f32 %v490, %v541
        %v564 = vmul.f32 %v493, %v541
        %v565 = vmul.f32 %v498, %v541
        %v566 = vmul.f32 %v501, %v541
        %v567 = vmul.f32 %v506, %v541
        %v568 = vmul.f32 %v509, %v541
        %v569 = vmul.f32 %v514, %v541
        %v570 = vmul.f32 %v517, %v541
        %v571 = vmul.f32 %v522, %v541
        %v572 = vmul.f32 %v525, %v541
        %v573 = vmul.f32 %v530, %v541
        %v574 = vmul.f32 %v533, %v541
        %v575 = vld [vmem:[%s3] sm:$0x1]
        %v577 = vlaneseq
        %v578 = vshrl.u32 %v577, 7
        %v579 = vsub.s32 0, %v578
        %v580 = vrot.slane %v575, %v579
        %v582 = vadd.f32 %v543, %v580
        %v583 = vadd.f32 %v544, %v580
        %v584 = vadd.f32 %v545, %v580
        %v585 = vadd.f32 %v546, %v580
        %v586 = vadd.f32 %v547, %v580
        %v587 = vadd.f32 %v548, %v580
        %v588 = vadd.f32 %v549, %v580
        %v589 = vadd.f32 %v550, %v580
        %v590 = vadd.f32 %v551, %v580
        %v591 = vadd.f32 %v552, %v580
        %v592 = vadd.f32 %v553, %v580
        %v593 = vadd.f32 %v554, %v580
        %v594 = vadd.f32 %v555, %v580
        %v595 = vadd.f32 %v556, %v580
        %v596 = vadd.f32 %v557, %v580
        %v597 = vadd.f32 %v558, %v580
        %v598 = vadd.f32 %v559, %v580
        %v599 = vadd.f32 %v560, %v580
        %v600 = vadd.f32 %v561, %v580
        %v601 = vadd.f32 %v562, %v580
        %v602 = vadd.f32 %v563, %v580
        %v603 = vadd.f32 %v564, %v580
        %v604 = vadd.f32 %v565, %v580
        %v605 = vadd.f32 %v566, %v580
        %v606 = vadd.f32 %v567, %v580
        %v607 = vadd.f32 %v568, %v580
        %v608 = vadd.f32 %v569, %v580
        %v609 = vadd.f32 %v570, %v580
        %v610 = vadd.f32 %v571, %v580
        %v611 = vadd.f32 %v572, %v580
        %v612 = vadd.f32 %v573, %v580
        %v613 = vadd.f32 %v574, %v580
        %vm614 = vcmp.gt.f32.partialorder %v582, 0.0
        %vm615 = vcmp.gt.f32.partialorder %v583, 0.0
        %vm616 = vcmp.gt.f32.partialorder %v584, 0.0
        %vm617 = vcmp.gt.f32.partialorder %v585, 0.0
        %vm618 = vcmp.gt.f32.partialorder %v586, 0.0
        %vm619 = vcmp.gt.f32.partialorder %v587, 0.0
        %vm620 = vcmp.gt.f32.partialorder %v588, 0.0
        %vm621 = vcmp.gt.f32.partialorder %v589, 0.0
        %vm622 = vcmp.gt.f32.partialorder %v590, 0.0
        %vm623 = vcmp.gt.f32.partialorder %v591, 0.0
        %vm624 = vcmp.gt.f32.partialorder %v592, 0.0
        %vm625 = vcmp.gt.f32.partialorder %v593, 0.0
        %vm626 = vcmp.gt.f32.partialorder %v594, 0.0
        %vm627 = vcmp.gt.f32.partialorder %v595, 0.0
        %vm628 = vcmp.gt.f32.partialorder %v596, 0.0
        %vm629 = vcmp.gt.f32.partialorder %v597, 0.0
        %vm630 = vcmp.gt.f32.partialorder %v598, 0.0
        %vm631 = vcmp.gt.f32.partialorder %v599, 0.0
        %vm632 = vcmp.gt.f32.partialorder %v600, 0.0
        %vm633 = vcmp.gt.f32.partialorder %v601, 0.0
        %vm634 = vcmp.gt.f32.partialorder %v602, 0.0
        %vm635 = vcmp.gt.f32.partialorder %v603, 0.0
        %vm636 = vcmp.gt.f32.partialorder %v604, 0.0
        %vm637 = vcmp.gt.f32.partialorder %v605, 0.0
        %vm638 = vcmp.gt.f32.partialorder %v606, 0.0
        %vm639 = vcmp.gt.f32.partialorder %v607, 0.0
        %vm640 = vcmp.gt.f32.partialorder %v608, 0.0
        %vm641 = vcmp.gt.f32.partialorder %v609, 0.0
        %vm642 = vcmp.gt.f32.partialorder %v610, 0.0
        %vm643 = vcmp.gt.f32.partialorder %v611, 0.0
        %vm644 = vcmp.gt.f32.partialorder %v612, 0.0
        %vm645 = vcmp.gt.f32.partialorder %v613, 0.0
        %v646 = vmul.f32 %v582, 0.2
        %v647 = vmul.f32 %v583, 0.2
        %v648 = vmul.f32 %v584, 0.2
        %v649 = vmul.f32 %v585, 0.2
        %v650 = vmul.f32 %v586, 0.2
        %v651 = vmul.f32 %v587, 0.2
        %v652 = vmul.f32 %v588, 0.2
        %v653 = vmul.f32 %v589, 0.2
        %v654 = vmul.f32 %v590, 0.2
        %v655 = vmul.f32 %v591, 0.2
        %v656 = vmul.f32 %v592, 0.2
        %v657 = vmul.f32 %v593, 0.2
        %v658 = vmul.f32 %v594, 0.2
        %v659 = vmul.f32 %v595, 0.2
        %v660 = vmul.f32 %v596, 0.2
        %v661 = vmul.f32 %v597, 0.2
        %v662 = vmul.f32 %v598, 0.2
        %v663 = vmul.f32 %v599, 0.2
        %v664 = vmul.f32 %v600, 0.2
        %v665 = vmul.f32 %v601, 0.2
        %v666 = vmul.f32 %v602, 0.2
        %v667 = vmul.f32 %v603, 0.2
        %v668 = vmul.f32 %v604, 0.2
        %v669 = vmul.f32 %v605, 0.2
        %v670 = vmul.f32 %v606, 0.2
        %v671 = vmul.f32 %v607, 0.2
        %v672 = vmul.f32 %v608, 0.2
        %v673 = vmul.f32 %v609, 0.2
        %v674 = vmul.f32 %v610, 0.2
        %v675 = vmul.f32 %v611, 0.2
        %v676 = vmul.f32 %v612, 0.2
        %v677 = vmul.f32 %v613, 0.2
        %v678 = vsel %vm614, %v582, %v646
        %v679 = vsel %vm615, %v583, %v647
        %v680 = vsel %vm616, %v584, %v648
        %v681 = vsel %vm617, %v585, %v649
        %v682 = vsel %vm618, %v586, %v650
        %v683 = vsel %vm619, %v587, %v651
        %v684 = vsel %vm620, %v588, %v652
        %v685 = vsel %vm621, %v589, %v653
        %v686 = vsel %vm622, %v590, %v654
        %v687 = vsel %vm623, %v591, %v655
        %v688 = vsel %vm624, %v592, %v656
        %v689 = vsel %vm625, %v593, %v657
        %v690 = vsel %vm626, %v594, %v658
        %v691 = vsel %vm627, %v595, %v659
        %v692 = vsel %vm628, %v596, %v660
        %v693 = vsel %vm629, %v597, %v661
        %v694 = vsel %vm630, %v598, %v662
        %v695 = vsel %vm631, %v599, %v663
        %v696 = vsel %vm632, %v600, %v664
        %v697 = vsel %vm633, %v601, %v665
        %v698 = vsel %vm634, %v602, %v666
        %v699 = vsel %vm635, %v603, %v667
        %v700 = vsel %vm636, %v604, %v668
        %v701 = vsel %vm637, %v605, %v669
        %v702 = vsel %vm638, %v606, %v670
        %v703 = vsel %vm639, %v607, %v671
        %v704 = vsel %vm640, %v608, %v672
        %v705 = vsel %vm641, %v609, %v673
        %v706 = vsel %vm642, %v610, %v674
        %v707 = vsel %vm643, %v611, %v675
        %v708 = vsel %vm644, %v612, %v676
        %v709 = vsel %vm645, %v613, %v677
        %v710 = vpack.c.bf16 %v679, %v678
        %v711 = vpack.c.bf16 %v681, %v680
        %v712 = vpack.c.bf16 %v683, %v682
        %v713 = vpack.c.bf16 %v685, %v684
        %v714 = vpack.c.bf16 %v687, %v686
        %v715 = vpack.c.bf16 %v689, %v688
        %v716 = vpack.c.bf16 %v691, %v690
        %v717 = vpack.c.bf16 %v693, %v692
        %v718 = vpack.c.bf16 %v695, %v694
        %v719 = vpack.c.bf16 %v697, %v696
        %v720 = vpack.c.bf16 %v699, %v698
        %v721 = vpack.c.bf16 %v701, %v700
        %v722 = vpack.c.bf16 %v703, %v702
        %v723 = vpack.c.bf16 %v705, %v704
        %v724 = vpack.c.bf16 %v707, %v706
        %v725 = vpack.c.bf16 %v709, %v708
        %v742 = vunpack.c.l.b16 %v710
        %v743 = vunpack.c.h.b16 %v710
        %v744 = vunpack.c.l.b16 %v711
        %v745 = vunpack.c.h.b16 %v711
        %v746 = vunpack.c.l.b16 %v712
        %v747 = vunpack.c.h.b16 %v712
        %v748 = vunpack.c.l.b16 %v713
        %v749 = vunpack.c.h.b16 %v713
        %v750 = vunpack.c.l.b16 %v714
        %v751 = vunpack.c.h.b16 %v714
        %v752 = vunpack.c.l.b16 %v715
        %v753 = vunpack.c.h.b16 %v715
        %v754 = vunpack.c.l.b16 %v716
        %v755 = vunpack.c.h.b16 %v716
        %v756 = vunpack.c.l.b16 %v717
        %v757 = vunpack.c.h.b16 %v717
        %v758 = vunpack.c.l.b16 %v718
        %v759 = vunpack.c.h.b16 %v718
        %v760 = vunpack.c.l.b16 %v719
        %v761 = vunpack.c.h.b16 %v719
        %v762 = vunpack.c.l.b16 %v720
        %v763 = vunpack.c.h.b16 %v720
        %v764 = vunpack.c.l.b16 %v721
        %v765 = vunpack.c.h.b16 %v721
        %v766 = vunpack.c.l.b16 %v722
        %v767 = vunpack.c.h.b16 %v722
        %v768 = vunpack.c.l.b16 %v723
        %v769 = vunpack.c.h.b16 %v723
        %v770 = vunpack.c.l.b16 %v724
        %v771 = vunpack.c.h.b16 %v724
        %v772 = vunpack.c.l.b16 %v725
        %v773 = vunpack.c.h.b16 %v725
        %v774 = vpack.c.b16 %v742, %v742
        %v775 = vpack.c.b16 %v743, %v743
        %v776 = vpack.c.b16 %v744, %v744
        %v777 = vpack.c.b16 %v745, %v745
        %v778 = vpack.c.b16 %v746, %v746
        %v779 = vpack.c.b16 %v747, %v747
        %v780 = vpack.c.b16 %v748, %v748
        %v781 = vpack.c.b16 %v749, %v749
        %v782 = vpack.c.b16 %v750, %v750
        %v783 = vpack.c.b16 %v751, %v751
        %v784 = vpack.c.b16 %v752, %v752
        %v785 = vpack.c.b16 %v753, %v753
        %v786 = vpack.c.b16 %v754, %v754
        %v787 = vpack.c.b16 %v755, %v755
        %v788 = vpack.c.b16 %v756, %v756
        %v789 = vpack.c.b16 %v757, %v757
        %v790 = vpack.c.b16 %v758, %v758
        %v791 = vpack.c.b16 %v759, %v759
        %v792 = vpack.c.b16 %v760, %v760
        %v793 = vpack.c.b16 %v761, %v761
        %v794 = vpack.c.b16 %v762, %v762
        %v795 = vpack.c.b16 %v763, %v763
        %v796 = vpack.c.b16 %v764, %v764
        %v797 = vpack.c.b16 %v765, %v765
        %v798 = vpack.c.b16 %v766, %v766
        %v799 = vpack.c.b16 %v767, %v767
        %v800 = vpack.c.b16 %v768, %v768
        %v801 = vpack.c.b16 %v769, %v769
        %v802 = vpack.c.b16 %v770, %v770
        %v803 = vpack.c.b16 %v771, %v771
        %v804 = vpack.c.b16 %v772, %v772
        %v805 = vpack.c.b16 %v773, %v773
        %838 = vst [vmem:[%s191] sm:$0xf] %v774
        %839 = vst [vmem:[%s191 + $0x4] sm:$0xf] %v775
        %840 = vst [vmem:[%s191 + $0x8] sm:$0xf] %v776
        %841 = vst [vmem:[%s191 + $0xc] sm:$0xf] %v777
        %842 = vst [vmem:[%s191 + $0x10] sm:$0xf] %v778
        %843 = vst [vmem:[%s191 + $0x14] sm:$0xf] %v779
        %844 = vst [vmem:[%s191 + $0x18] sm:$0xf] %v780
        %845 = vst [vmem:[%s191 + $0x1c] sm:$0xf] %v781
        %846 = vst [vmem:[%s191 + $0x20] sm:$0xf] %v782
        %847 = vst [vmem:[%s191 + $0x24] sm:$0xf] %v783
        %848 = vst [vmem:[%s191 + $0x28] sm:$0xf] %v784
        %849 = vst [vmem:[%s191 + $0x2c] sm:$0xf] %v785
        %850 = vst [vmem:[%s191 + $0x30] sm:$0xf] %v786
        %851 = vst [vmem:[%s191 + $0x34] sm:$0xf] %v787
        %852 = vst [vmem:[%s191 + $0x38] sm:$0xf] %v788
        %853 = vst [vmem:[%s191 + $0x3c] sm:$0xf] %v789
        %854 = vst [vmem:[%s191 + $0x40] sm:$0xf] %v790
        %855 = vst [vmem:[%s191 + $0x44] sm:$0xf] %v791
        %856 = vst [vmem:[%s191 + $0x48] sm:$0xf] %v792
        %857 = vst [vmem:[%s191 + $0x4c] sm:$0xf] %v793
        %858 = vst [vmem:[%s191 + $0x50] sm:$0xf] %v794
        %859 = vst [vmem:[%s191 + $0x54] sm:$0xf] %v795
        %860 = vst [vmem:[%s191 + $0x58] sm:$0xf] %v796
        %861 = vst [vmem:[%s191 + $0x5c] sm:$0xf] %v797
        %862 = vst [vmem:[%s191 + $0x60] sm:$0xf] %v798
        %863 = vst [vmem:[%s191 + $0x64] sm:$0xf] %v799
        %864 = vst [vmem:[%s191 + $0x68] sm:$0xf] %v800
        %865 = vst [vmem:[%s191 + $0x6c] sm:$0xf] %v801
        %866 = vst [vmem:[%s191 + $0x70] sm:$0xf] %v802
        %867 = vst [vmem:[%s191 + $0x74] sm:$0xf] %v803
        %868 = vst [vmem:[%s191 + $0x78] sm:$0xf] %v804
        %869 = vst [vmem:[%s191 + $0x7c] sm:$0xf] %v805
        %s870 = sand.u32 %s115, 1
        %s871 = scalar_lea.sflag [#allocation3], %s870
        %s872 = sand.u32 %s115, 1
        %s873 = smul.addr %s872, 128
        %s874 = scalar_lea.vmem [#allocation2], %s873
        // Predicated region
        $region37: #{tpu_custom_call.1} parent=35 // pred_check
          %p875 = pneg %p125
        $region38: #{tpu_custom_call.1} parent=35 // pred_check_branch
          %877 = sbr.rel (%p875) target = $region40
        $region39: #{tpu_custom_call.1} parent=35 // pred_region
          %s878 = smul.u32 32, %s18
          %s880 = ssub.s32 2048, 2048
          %881 = vsyncadd %s871, %s880
          %s882 = smul.addr %s878, 64
          %s883 = scalar_lea.hbm %s4, %s882
          %s884 = sshll.u32 %s874, 4
          %s885 = int_to_ptr.vmem [resolvable:$true] %s884
          %890 = dma.vmem_to_hbm [thread:$0]  %s885, 2048, %s883, %s871, 64, 64, 4
        $region40: #{tpu_custom_call.1} parent=35 // pred_fallthru
          _
      $region36: #{tpu_custom_call.1} parent=5 // pred_fallthru
        _
      %p891 = scmp.le.s32.totalorder 2, %s13
      // Predicated region
      $region41: #{tpu_custom_call.1} parent=5 // pred_check
        %p892 = pneg %p891
      $region42: #{tpu_custom_call.1} parent=5 // pred_check_branch
        %894 = sbr.rel (%p892) target = $region44
      $region43: #{tpu_custom_call.1} parent=5 // pred_region
        %s895 = ssub.s32 %s13, 2
        // Predicated region
        $region45: #{tpu_custom_call.1} parent=43 // pred_check
          %p896 = pneg %p131
        $region46: #{tpu_custom_call.1} parent=43 // pred_check_branch
          %898 = sbr.rel (%p896) target = $region48
        $region47: #{tpu_custom_call.1} parent=43 // pred_region
          %s899 = sand.u32 %s116, 1
          %s900 = scalar_lea.sflag [#allocation3], %s899
          %s901 = sand.u32 %s116, 1
          %s902 = smul.addr %s901, 128
          %s903 = scalar_lea.vmem [#allocation2], %s902
          %904 = dma.done %s900, 2048
        $region48: #{tpu_custom_call.1} parent=43 // pred_fallthru
          _
      $region44: #{tpu_custom_call.1} parent=5 // pred_fallthru
        _
    $region6: #{tpu_custom_call.1} parent=1 // loop_footer
      %s17 = sadd.s32 1, %s13
    $region7: #{tpu_custom_call.1} parent=1 // loop_footer_branch
      %12 = sbr.rel target = $region3
    $region8: #{tpu_custom_call.1} parent=1 // loop_exit
      _
    %905 = vsyncpa [#allocation3], 1
    %s906 = scalar_lea.sflag [#allocation3], 1
    %907 = vsyncpa %s906, 1

</llo_original>
